<compile_context>
chip_gen: v7x
topology: tpu7x:2x2x1
jax: 0.10.0
libtpu: 0.0.40
codegen_flags: <defaults>
</compile_context>

<pallas_src>
import jax
import jax.numpy as jnp
from jax.experimental import pallas as pl
from jax.experimental.pallas import tpu as pltpu


def _round_up(x, m):
    return ((x + m - 1) // m) * m


def _softplus(x):
    # Numerically stable softplus; matches torch.nn.Softplus() (beta=1,
    # threshold=20) to well within float32 tolerance.
    return jnp.maximum(x, 0.0) + jnp.log1p(jnp.exp(-jnp.abs(x)))


def _classifier_kernel(edge_ref, w_ref, b_ref, zs_ref, zi_ref, zoff_ref,
                       pred_ref):
    # Linear: edge_feat @ W + b  (tiny MXU matmul, f32 accumulation).
    proj = jnp.dot(
        edge_ref[...], w_ref[...],
        preferred_element_type=jnp.float32,
        precision=jax.lax.Precision.HIGHEST,
    )
    z_ability = zs_ref[...] + proj + b_ref[...]            # [tile, C_out]
    z_edge = _softplus(zi_ref[...]) * z_ability            # [tile, C_out]
    # Per-row reduction over the feature (lane) axis, relaid out lane-dense
    # (XLU-slot work, free under the HBM roofline), fused with the z_offset
    # add so the whole op is a single unmasked lane-dense store.
    row_sum = jnp.sum(z_edge, axis=-1)                     # [tile]
    pred_ref[...] = row_sum.reshape(pred_ref.shape) + zoff_ref[...]


def classifier_heterogeneous_forward(
    x_student, x_item, z_student, z_item, z_offset, edge_feat, x_offset, W, b,
    *, tile_n=8192,
):
    """Pallas forward of Classifier_heterogeneous.

    x_student / x_item / x_offset only populate self.x_dict in the PyTorch
    module; they do not influence the returned `pred`.
    """
    del x_student, x_item, x_offset
    N, c_in = edge_feat.shape
    c_out = W.shape[1]

    f32 = jnp.float32
    edge_feat = edge_feat.astype(f32)
    z_student = z_student.astype(f32)
    z_item = z_item.astype(f32)
    W2 = W.astype(f32)
    b2 = b.reshape(1, c_out).astype(f32)

    # Row tile: multiple of 8, capped near N/8 so the grid has ~8+ steps
    # (keeps both v7x TensorCores busy, amortizes ~0.35us/step overhead).
    tile = min(_round_up(tile_n, 8), max(_round_up(pl.cdiv(N, 8), 8), 8))
    n_tiles = pl.cdiv(N, tile)          # streamed inputs are NOT padded
    n_total = n_tiles * tile

    # z_offset goes in lane-dense: (N,1) -> (n_tiles, 1, tile); only this
    # tiny vector gets padded to a tile multiple.
    zoff_flat = z_offset.reshape(-1).astype(f32)
    if n_total != N:
        zoff_flat = jnp.pad(zoff_flat, (0, n_total - N))
    zoff3d = zoff_flat.reshape(n_tiles, 1, tile)

    pred3d = pl.pallas_call(
        _classifier_kernel,
        out_shape=jax.ShapeDtypeStruct((n_tiles, 1, tile), f32),
        grid_spec=pltpu.PrefetchScalarGridSpec(
            num_scalar_prefetch=0,
            grid=(n_tiles,),
            in_specs=[
                pl.BlockSpec((tile, c_in), lambda i: (i, 0)),     # edge_feat
                pl.BlockSpec((c_in, c_out), lambda i: (0, 0)),    # W (resident)
                pl.BlockSpec((1, c_out), lambda i: (0, 0)),       # b (resident)
                pl.BlockSpec((tile, c_out), lambda i: (i, 0)),    # z_student
                pl.BlockSpec((tile, c_out), lambda i: (i, 0)),    # z_item
                pl.BlockSpec((1, 1, tile), lambda i: (i, 0, 0)),  # z_offset
            ],
            out_specs=pl.BlockSpec((1, 1, tile), lambda i: (i, 0, 0)),
        ),
        compiler_params=pltpu.CompilerParams(
            # Row tiles are fully independent -> megacore sharding on v7x.
            dimension_semantics=("parallel",),
        ),
    )(edge_feat, W2, b2, z_student, z_item, zoff3d)

    # Lane-dense slab back to (N, 1); garbage rows from the partial boundary
    # block are discarded by the slice.
    return pred3d.reshape(-1)[:N].reshape(N, 1)


# TODO(synk): the PyTorch module also stashes self.x_dict / self.z_student /
# self.z_item (incl. softplus(x_item) as "discrimination") as side-effects;
# that stateful caching has no functional equivalent here and is not computed.


if __name__ == "__main__":
    # Small shapes consistent with the module: N edges, input_channel, out_channels.
    N = 400
    input_channel = 16
    out_channels = 32

    key = jax.random.PRNGKey(0)
    ks = jax.random.split(key, 9)

    # Deterministic parameter init (Linear(input_channel, out_channels)).
    W = jax.random.normal(ks[0], (input_channel, out_channels), jnp.float32) * 0.1
    b = jax.random.normal(ks[1], (out_channels,), jnp.float32) * 0.1

    # Inputs.
    x_student = jax.random.normal(ks[2], (N, out_channels), jnp.float32)
    x_item    = jax.random.normal(ks[3], (N, out_channels), jnp.float32)
    z_student = jax.random.normal(ks[4], (N, out_channels), jnp.float32)
    z_item    = jax.random.normal(ks[5], (N, out_channels), jnp.float32)
    z_offset  = jax.random.normal(ks[6], (N, 1), jnp.float32)
    edge_feat = jax.random.normal(ks[7], (N, input_channel), jnp.float32)
    x_offset  = jax.random.normal(ks[8], (N, 1), jnp.float32)

    # Auto tile picks 56 rows here -> grid of 8 steps with a partial boundary
    # block (400 = 7*56 + 8), exercising the unpadded cdiv path.
    pred = classifier_heterogeneous_forward(
        x_student, x_item, z_student, z_item, z_offset, edge_feat, x_offset,
        W, b,
    )
    pred = jax.block_until_ready(pred)

    # Pure-JAX reference check (matmul at HIGHEST precision to match kernel).
    proj_ref = jnp.dot(edge_feat, W, precision=jax.lax.Precision.HIGHEST)
    z_ability_ref = z_student + (proj_ref + b)
    z_edge_ref = jax.nn.softplus(z_item) * z_ability_ref
    pred_ref = jnp.sum(z_edge_ref, axis=-1, keepdims=True) + z_offset

    assert pred.shape == (N, 1)
    assert jnp.allclose(pred, pred_ref, atol=1e-4, rtol=1e-4)

    print("KERNEL_OK")
</pallas_src>

<mosaic_0001>
module attributes {stable_mosaic.version = 11 : i64} {
  func.func @_classifier_kernel(%arg0: i32, %arg1: memref<56x16xf32, #tpu.memory_space<vmem>>, %arg2: memref<16x32xf32, #tpu.memory_space<vmem>>, %arg3: memref<1x32xf32, #tpu.memory_space<vmem>>, %arg4: memref<56x32xf32, #tpu.memory_space<vmem>>, %arg5: memref<56x32xf32, #tpu.memory_space<vmem>>, %arg6: memref<1x1x56xf32, #tpu.memory_space<vmem>>, %arg7: memref<1x1x56xf32, #tpu.memory_space<vmem>>) attributes {dimension_semantics = [#tpu.dimension_semantics<parallel>], iteration_bounds = array<i64: 8>, scalar_prefetch = 0 : i64, scratch_operands = 0 : i64, tpu.core_type = #tpu.core_type<tc>, window_params = [{transform_indices = @transform_0, window_bounds = array<i64: 56, 16>}, {pipeline_mode = #tpu.pipeline_mode<synchronous>, transform_indices = @transform_1, window_bounds = array<i64: 16, 32>}, {pipeline_mode = #tpu.pipeline_mode<synchronous>, transform_indices = @transform_2, window_bounds = array<i64: 1, 32>}, {transform_indices = @transform_3, window_bounds = array<i64: 56, 32>}, {transform_indices = @transform_4, window_bounds = array<i64: 56, 32>}, {transform_indices = @transform_5, window_bounds = array<i64: 1, 1, 56>}, {transform_indices = @transform_6, window_bounds = array<i64: 1, 1, 56>}]} {
    %c0 = arith.constant 0 : index
    %c0_0 = arith.constant 0 : index
    %0 = vector.load %arg1[%c0, %c0_0] : memref<56x16xf32, #tpu.memory_space<vmem>>, vector<56x16xf32>
    %c0_1 = arith.constant 0 : index
    %c0_2 = arith.constant 0 : index
    %1 = vector.load %arg2[%c0_1, %c0_2] : memref<16x32xf32, #tpu.memory_space<vmem>>, vector<16x32xf32>
    %cst = arith.constant dense<0.000000e+00> : vector<56x32xf32>
    %2 = tpu.matmul %0, %1, %cst {dimension_numbers = #tpu.dot_dimension_numbers<[1], [0], [0], [1], [0, 0, 1, 1], [], []>, precision = #tpu.contract_precision<fp32>} : vector<56x16xf32>, vector<16x32xf32>, vector<56x32xf32> -> vector<56x32xf32>
    %c0_3 = arith.constant 0 : index
    %c0_4 = arith.constant 0 : index
    %3 = vector.load %arg4[%c0_3, %c0_4] : memref<56x32xf32, #tpu.memory_space<vmem>>, vector<56x32xf32>
    %4 = arith.addf %3, %2 : vector<56x32xf32>
    %c0_5 = arith.constant 0 : index
    %c0_6 = arith.constant 0 : index
    %5 = vector.load %arg3[%c0_5, %c0_6] : memref<1x32xf32, #tpu.memory_space<vmem>>, vector<1x32xf32>
    %6 = vector.broadcast %5 : vector<1x32xf32> to vector<56x32xf32>
    %7 = arith.addf %4, %6 : vector<56x32xf32>
    %c0_7 = arith.constant 0 : index
    %c0_8 = arith.constant 0 : index
    %8 = vector.load %arg5[%c0_7, %c0_8] : memref<56x32xf32, #tpu.memory_space<vmem>>, vector<56x32xf32>
    %cst_9 = arith.constant 0.000000e+00 : f32
    %9 = vector.broadcast %cst_9 : f32 to vector<56x32xf32>
    %10 = arith.maximumf %8, %9 : vector<56x32xf32>
    %11 = math.absf %8 : vector<56x32xf32>
    %cst_10 = arith.constant 0.000000e+00 : f32
    %12 = vector.broadcast %cst_10 : f32 to vector<56x32xf32>
    %13 = arith.subf %12, %11 : vector<56x32xf32>
    %14 = math.exp %13 : vector<56x32xf32>
    %15 = math.log1p %14 : vector<56x32xf32>
    %16 = arith.addf %10, %15 : vector<56x32xf32>
    %17 = arith.mulf %16, %7 : vector<56x32xf32>
    %cst_11 = arith.constant dense<0.000000e+00> : vector<56xf32>
    %18 = vector.multi_reduction <add>, %17, %cst_11 [1] : vector<56x32xf32> to vector<56xf32>
    %19 = vector.shape_cast %18 : vector<56xf32> to vector<1x1x56xf32>
    %c0_12 = arith.constant 0 : index
    %c0_13 = arith.constant 0 : index
    %c0_14 = arith.constant 0 : index
    %20 = vector.load %arg6[%c0_12, %c0_13, %c0_14] : memref<1x1x56xf32, #tpu.memory_space<vmem>>, vector<1x1x56xf32>
    %21 = arith.addf %19, %20 : vector<1x1x56xf32>
    %c0_15 = arith.constant 0 : index
    %c0_16 = arith.constant 0 : index
    %c0_17 = arith.constant 0 : index
    %22 = vector.load %arg7[%c0_15, %c0_16, %c0_17] : memref<1x1x56xf32, #tpu.memory_space<vmem>>, vector<1x1x56xf32>
    tpu.vector_store %arg7[%c0_15, %c0_16, %c0_17], %21 {strides = array<i32>} : memref<1x1x56xf32, #tpu.memory_space<vmem>>, vector<1x1x56xf32>,
    return
  }
  func.func @transform_0(%arg0: i32) -> (i32, i32) {
    %c0_i32 = arith.constant 0 : i32
    %c0_i32_0 = arith.constant 0 : i32
    return %arg0, %c0_i32 : i32, i32
  }
  func.func @transform_1(%arg0: i32) -> (i32, i32) {
    %c0_i32 = arith.constant 0 : i32
    %c0_i32_0 = arith.constant 0 : i32
    %c0_i32_1 = arith.constant 0 : i32
    return %c0_i32, %c0_i32_0 : i32, i32
  }
  func.func @transform_2(%arg0: i32) -> (i32, i32) {
    %c0_i32 = arith.constant 0 : i32
    %c0_i32_0 = arith.constant 0 : i32
    %c0_i32_1 = arith.constant 0 : i32
    return %c0_i32, %c0_i32_0 : i32, i32
  }
  func.func @transform_3(%arg0: i32) -> (i32, i32) {
    %c0_i32 = arith.constant 0 : i32
    %c0_i32_0 = arith.constant 0 : i32
    return %arg0, %c0_i32 : i32, i32
  }
  func.func @transform_4(%arg0: i32) -> (i32, i32) {
    %c0_i32 = arith.constant 0 : i32
    %c0_i32_0 = arith.constant 0 : i32
    return %arg0, %c0_i32 : i32, i32
  }
  func.func @transform_5(%arg0: i32) -> (i32, i32, i32) {
    %c0_i32 = arith.constant 0 : i32
    %c0_i32_0 = arith.constant 0 : i32
    %c0_i32_1 = arith.constant 0 : i32
    return %arg0, %c0_i32, %c0_i32_0 : i32, i32, i32
  }
  func.func @transform_6(%arg0: i32) -> (i32, i32, i32) {
    %c0_i32 = arith.constant 0 : i32
    %c0_i32_0 = arith.constant 0 : i32
    %c0_i32_1 = arith.constant 0 : i32
    return %arg0, %c0_i32, %c0_i32_0 : i32, i32, i32
  }
}

</mosaic_0001>

<llo_original>
// kernel: tpu_custom_call.1
$region0: #{tpu_custom_call.1}
  #allocation0 [shape = 'u32[]', space=smem, size = 0x4, offset = 0x4, fixed_abs, tag = 'smem constant byte address 0x4 - core index']
  #allocation1 [shape = 'u32[144,128]{1,0:T(1,128)}', space=vmem, size = 0x12000, scoped, tag = 'internal scratch']
  %s0 = inlined_call_operand.vmem [shape: f32[400,16], index: 0, kind: input, shape index: {}]
  %s1 = inlined_call_operand.vmem [shape: f32[16,32], index: 1, kind: input, shape index: {}]
  %s2 = inlined_call_operand.vmem [shape: f32[1,32], index: 2, kind: input, shape index: {}]
  %s3 = inlined_call_operand.vmem [shape: f32[400,32], index: 3, kind: input, shape index: {}]
  %s4 = inlined_call_operand.vmem [shape: f32[400,32], index: 4, kind: input, shape index: {}]
  %s5 = inlined_call_operand.vmem [shape: f32[8,1,56], index: 5, kind: input, shape index: {}]
  %s6 = inlined_call_operand.hbm [shape: f32[8,1,56], index: 6, kind: output, shape index: {}]
  %s7 = sld [smem:[#allocation0]]
  $region57: #{tpu_custom_call.1} parent=0
    _
  %s9 = ssub.s32 1, %s7
  %s10 = scalar_select 0, %s9, %s7
  $region1: #{tpu_custom_call.1} parent=0
    #allocation2 [shape = 'u8[1024]{0}', space=vmem, size = 0x400, scoped, tag = 'output window, operand 0']
    #allocation3 [shape = 's32[2]{0}', space=sflag, size = 0x8, scoped, tag = 'scoped memory for tpu_custom_call.1']
    %11 = vsyncpa [#allocation3], 0
    %s12 = scalar_lea.sflag [#allocation3], 1
    %13 = vsyncpa %s12, 0
    loop: start=0, step=1, limit=10
    $region2: #{tpu_custom_call.1} parent=1 // loop_pre_header
      _
    $region3: #{tpu_custom_call.1} parent=1 // loop_header
      %s15 = sphi 0, %s19
      %p16 = scmp.ge.s32.totalorder %s15, 10
      %s25 = sphi 0, %s27
      %s28 = sphi 0, %s25
      %s29 = sphi 0, %s28
      %s45 = sphi 0, %s29
      %s49 = sphi 0, %s49
      %s51 = sphi 0, %s49
      %s52 = sphi 0, %s51
      %s66 = sphi 0, %s52
      %s70 = sphi 0, %s70
      %s72 = sphi 0, %s70
      %s73 = sphi 0, %s72
      %s87 = sphi 0, %s73
      %s93 = sphi 0, %s95
      %s96 = sphi 0, %s93
      %s97 = sphi 0, %s96
      %s113 = sphi 0, %s97
      %s119 = sphi 0, %s121
      %s122 = sphi 0, %s119
      %s123 = sphi 0, %s122
      %s139 = sphi 0, %s123
      %s145 = sphi 0, %s147
      %s148 = sphi 0, %s145
      %s149 = sphi 0, %s148
      %s165 = sphi 0, %s149
      %s171 = sphi 0, %s173
      %s174 = sphi 0, %s171
      %s175 = sphi 0, %s174
      %s191 = sphi 0, %s175
    $region4: #{tpu_custom_call.1} parent=1 // loop_header_branch
      %18 = sbr.rel (%p16) target = $region8
    $region5: #{tpu_custom_call.1} parent=1 // loop_body
      %s20 = ssub.s32 %s15, 1
      %s21 = ssub.s32 %s15, 2
      %s22 = sadd.s32 %s15, 1
      %s23 = ssub.s32 %s15, %s22
      %p24 = scmp.eq.s32.totalorder %s23, 0
      %s26 = sadd.s32 %s25, 1
      %s27 = scalar_select %p24, %s25, %s26
      %p30 = pneg %p24
      %p31 = scmp.eq.s32.totalorder %s15, 7
      %p32 = por %p30, %p31
      %p33 = scmp.ne.s32.totalorder %s25, %s28
      %p34 = scmp.eq.s32.totalorder %s15, 0
      %p35 = por %p33, %p34
      %p36 = scmp.ne.s32.totalorder %s25, %s28
      %p37 = scmp.eq.s32.totalorder %s20, 7
      %p38 = por %p36, %p37
      %p39 = scmp.ne.s32.totalorder %s28, %s29
      %p40 = scmp.eq.s32.totalorder %s20, 0
      %p41 = por %p39, %p40
      %p42 = scmp.ne.s32.totalorder %s28, %s29
      %p43 = scmp.eq.s32.totalorder %s21, 7
      %p44 = por %p42, %p43
      %p46 = scmp.ne.s32.totalorder %s29, %s45
      %p47 = scmp.eq.s32.totalorder %s21, 0
      %p48 = por %p46, %p47
      %s50 = sadd.s32 %s49, 1
      %p53 = scmp.eq.s32.totalorder %s15, 7
      %p54 = scmp.ne.s32.totalorder %s49, %s51
      %p55 = scmp.eq.s32.totalorder %s15, 0
      %p56 = por %p54, %p55
      %p57 = scmp.ne.s32.totalorder %s49, %s51
      %p58 = scmp.eq.s32.totalorder %s20, 7
      %p59 = por %p57, %p58
      %p60 = scmp.ne.s32.totalorder %s51, %s52
      %p61 = scmp.eq.s32.totalorder %s20, 0
      %p62 = por %p60, %p61
      %p63 = scmp.ne.s32.totalorder %s51, %s52
      %p64 = scmp.eq.s32.totalorder %s21, 7
      %p65 = por %p63, %p64
      %p67 = scmp.ne.s32.totalorder %s52, %s66
      %p68 = scmp.eq.s32.totalorder %s21, 0
      %p69 = por %p67, %p68
      %s71 = sadd.s32 %s70, 1
      %p74 = scmp.eq.s32.totalorder %s15, 7
      %p75 = scmp.ne.s32.totalorder %s70, %s72
      %p76 = scmp.eq.s32.totalorder %s15, 0
      %p77 = por %p75, %p76
      %p78 = scmp.ne.s32.totalorder %s70, %s72
      %p79 = scmp.eq.s32.totalorder %s20, 7
      %p80 = por %p78, %p79
      %p81 = scmp.ne.s32.totalorder %s72, %s73
      %p82 = scmp.eq.s32.totalorder %s20, 0
      %p83 = por %p81, %p82
      %p84 = scmp.ne.s32.totalorder %s72, %s73
      %p85 = scmp.eq.s32.totalorder %s21, 7
      %p86 = por %p84, %p85
      %p88 = scmp.ne.s32.totalorder %s73, %s87
      %p89 = scmp.eq.s32.totalorder %s21, 0
      %p90 = por %p88, %p89
      %s91 = ssub.s32 %s15, %s22
      %p92 = scmp.eq.s32.totalorder %s91, 0
      %s94 = sadd.s32 %s93, 1
      %s95 = scalar_select %p92, %s93, %s94
      %p98 = pneg %p92
      %p99 = scmp.eq.s32.totalorder %s15, 7
      %p100 = por %p98, %p99
      %p101 = scmp.ne.s32.totalorder %s93, %s96
      %p102 = scmp.eq.s32.totalorder %s15, 0
      %p103 = por %p101, %p102
      %p104 = scmp.ne.s32.totalorder %s93, %s96
      %p105 = scmp.eq.s32.totalorder %s20, 7
      %p106 = por %p104, %p105
      %p107 = scmp.ne.s32.totalorder %s96, %s97
      %p108 = scmp.eq.s32.totalorder %s20, 0
      %p109 = por %p107, %p108
      %p110 = scmp.ne.s32.totalorder %s96, %s97
      %p111 = scmp.eq.s32.totalorder %s21, 7
      %p112 = por %p110, %p111
      %p114 = scmp.ne.s32.totalorder %s97, %s113
      %p115 = scmp.eq.s32.totalorder %s21, 0
      %p116 = por %p114, %p115
      %s117 = ssub.s32 %s15, %s22
      %p118 = scmp.eq.s32.totalorder %s117, 0
      %s120 = sadd.s32 %s119, 1
      %s121 = scalar_select %p118, %s119, %s120
      %p124 = pneg %p118
      %p125 = scmp.eq.s32.totalorder %s15, 7
      %p126 = por %p124, %p125
      %p127 = scmp.ne.s32.totalorder %s119, %s122
      %p128 = scmp.eq.s32.totalorder %s15, 0
      %p129 = por %p127, %p128
      %p130 = scmp.ne.s32.totalorder %s119, %s122
      %p131 = scmp.eq.s32.totalorder %s20, 7
      %p132 = por %p130, %p131
      %p133 = scmp.ne.s32.totalorder %s122, %s123
      %p134 = scmp.eq.s32.totalorder %s20, 0
      %p135 = por %p133, %p134
      %p136 = scmp.ne.s32.totalorder %s122, %s123
      %p137 = scmp.eq.s32.totalorder %s21, 7
      %p138 = por %p136, %p137
      %p140 = scmp.ne.s32.totalorder %s123, %s139
      %p141 = scmp.eq.s32.totalorder %s21, 0
      %p142 = por %p140, %p141
      %s143 = ssub.s32 %s15, %s22
      %p144 = scmp.eq.s32.totalorder %s143, 0
      %s146 = sadd.s32 %s145, 1
      %s147 = scalar_select %p144, %s145, %s146
      %p150 = pneg %p144
      %p151 = scmp.eq.s32.totalorder %s15, 7
      %p152 = por %p150, %p151
      %p153 = scmp.ne.s32.totalorder %s145, %s148
      %p154 = scmp.eq.s32.totalorder %s15, 0
      %p155 = por %p153, %p154
      %p156 = scmp.ne.s32.totalorder %s145, %s148
      %p157 = scmp.eq.s32.totalorder %s20, 7
      %p158 = por %p156, %p157
      %p159 = scmp.ne.s32.totalorder %s148, %s149
      %p160 = scmp.eq.s32.totalorder %s20, 0
      %p161 = por %p159, %p160
      %p162 = scmp.ne.s32.totalorder %s148, %s149
      %p163 = scmp.eq.s32.totalorder %s21, 7
      %p164 = por %p162, %p163
      %p166 = scmp.ne.s32.totalorder %s149, %s165
      %p167 = scmp.eq.s32.totalorder %s21, 0
      %p168 = por %p166, %p167
      %s169 = ssub.s32 %s15, %s22
      %p170 = scmp.eq.s32.totalorder %s169, 0
      %s172 = sadd.s32 %s171, 1
      %s173 = scalar_select %p170, %s171, %s172
      %p176 = pneg %p170
      %p177 = scmp.eq.s32.totalorder %s15, 7
      %p178 = por %p176, %p177
      %p179 = scmp.ne.s32.totalorder %s171, %s174
      %p180 = scmp.eq.s32.totalorder %s15, 0
      %p181 = por %p179, %p180
      %p182 = scmp.ne.s32.totalorder %s171, %s174
      %p183 = scmp.eq.s32.totalorder %s20, 7
      %p184 = por %p182, %p183
      %p185 = scmp.ne.s32.totalorder %s174, %s175
      %p186 = scmp.eq.s32.totalorder %s20, 0
      %p187 = por %p185, %p186
      %p188 = scmp.ne.s32.totalorder %s174, %s175
      %p189 = scmp.eq.s32.totalorder %s21, 7
      %p190 = por %p188, %p189
      %p192 = scmp.ne.s32.totalorder %s175, %s191
      %p193 = scmp.eq.s32.totalorder %s21, 0
      %p194 = por %p192, %p193
      %p195 = scmp.le.s32.totalorder 1, %s15
      %p196 = scmp.lt.s32.totalorder %s15, 9
      %p197 = pnand %p195, %p196
      %p198 = pneg %p197
      // Predicated region
      $region9: #{tpu_custom_call.1} parent=5 // pred_check
        _
      $region10: #{tpu_custom_call.1} parent=5 // pred_check_branch
        %200 = sbr.rel (%p197) target = $region12
      $region11: #{tpu_custom_call.1} parent=5 // pred_region
        %s201 = ssub.s32 %s15, 1
        // Predicated region
        $region13: #{tpu_custom_call.1} parent=11 // pred_check
          %p202 = pneg %p62
        $region14: #{tpu_custom_call.1} parent=11 // pred_check_branch
          %204 = sbr.rel (%p202) target = $region16
        $region15: #{tpu_custom_call.1} parent=11 // pred_region
          _
        $region16: #{tpu_custom_call.1} parent=11 // pred_fallthru
          _
        // Predicated region
        $region17: #{tpu_custom_call.1} parent=11 // pred_check
          %p205 = pneg %p83
        $region18: #{tpu_custom_call.1} parent=11 // pred_check_branch
          %207 = sbr.rel (%p205) target = $region20
        $region19: #{tpu_custom_call.1} parent=11 // pred_region
          _
        $region20: #{tpu_custom_call.1} parent=11 // pred_fallthru
          _
      $region12: #{tpu_custom_call.1} parent=5 // pred_fallthru
        _
      %p208 = scmp.lt.s32.totalorder %s15, 8
      // Predicated region
      $region21: #{tpu_custom_call.1} parent=5 // pred_check
        %p209 = pneg %p208
      $region22: #{tpu_custom_call.1} parent=5 // pred_check_branch
        %211 = sbr.rel (%p209) target = $region24
      $region23: #{tpu_custom_call.1} parent=5 // pred_region
        // Predicated region
        $region25: #{tpu_custom_call.1} parent=23 // pred_check
          %p212 = pneg %p35
        $region26: #{tpu_custom_call.1} parent=23 // pred_check_branch
          %214 = sbr.rel (%p212) target = $region28
        $region27: #{tpu_custom_call.1} parent=23 // pred_region
          %s215 = smul.u32 7, %s15
          %s216 = ssub.s32 50, %s215
          %p217 = scmp.lt.s32.totalorder %s216, 7
          %s218 = scalar_select %p217, %s216, 7
          %s219 = smul.u32 128, %s218
          %p220 = scmp.lt.s32.totalorder %s215, 49
          %s221 = scalar_select %p220, %s215, 49
          %s222 = smul.addr %s221, 8
          %s223 = scalar_lea.vmem %s0, %s222
          %s224 = smul.u32 7, %s15
          %s225 = ssub.s32 50, %s224
          %p226 = scmp.lt.s32.totalorder %s225, 7
          %s227 = scalar_select %p226, %s225, 7
          %s228 = smul.u32 128, %s227
        $region28: #{tpu_custom_call.1} parent=23 // pred_fallthru
          _
        // Predicated region
        $region29: #{tpu_custom_call.1} parent=23 // pred_check
          %p229 = pneg %p103
        $region30: #{tpu_custom_call.1} parent=23 // pred_check_branch
          %231 = sbr.rel (%p229) target = $region32
        $region31: #{tpu_custom_call.1} parent=23 // pred_region
          %s232 = smul.u32 7, %s15
          %s233 = ssub.s32 50, %s232
          %p234 = scmp.lt.s32.totalorder %s233, 7
          %s235 = scalar_select %p234, %s233, 7
          %s236 = smul.u32 128, %s235
          %p237 = scmp.lt.s32.totalorder %s232, 49
          %s238 = scalar_select %p237, %s232, 49
          %s239 = smul.addr %s238, 8
          %s240 = scalar_lea.vmem %s3, %s239
          %s241 = smul.u32 7, %s15
          %s242 = ssub.s32 50, %s241
          %p243 = scmp.lt.s32.totalorder %s242, 7
          %s244 = scalar_select %p243, %s242, 7
          %s245 = smul.u32 128, %s244
        $region32: #{tpu_custom_call.1} parent=23 // pred_fallthru
          _
        // Predicated region
        $region33: #{tpu_custom_call.1} parent=23 // pred_check
          %p246 = pneg %p129
        $region34: #{tpu_custom_call.1} parent=23 // pred_check_branch
          %248 = sbr.rel (%p246) target = $region36
        $region35: #{tpu_custom_call.1} parent=23 // pred_region
          %s249 = smul.u32 7, %s15
          %s250 = ssub.s32 50, %s249
          %p251 = scmp.lt.s32.totalorder %s250, 7
          %s252 = scalar_select %p251, %s250, 7
          %s253 = smul.u32 128, %s252
          %p254 = scmp.lt.s32.totalorder %s249, 49
          %s255 = scalar_select %p254, %s249, 49
          %s256 = smul.addr %s255, 8
          %s257 = scalar_lea.vmem %s4, %s256
          %s258 = smul.u32 7, %s15
          %s259 = ssub.s32 50, %s258
          %p260 = scmp.lt.s32.totalorder %s259, 7
          %s261 = scalar_select %p260, %s259, 7
          %s262 = smul.u32 128, %s261
        $region36: #{tpu_custom_call.1} parent=23 // pred_fallthru
          _
        // Predicated region
        $region37: #{tpu_custom_call.1} parent=23 // pred_check
          %p263 = pneg %p155
        $region38: #{tpu_custom_call.1} parent=23 // pred_check_branch
          %265 = sbr.rel (%p263) target = $region40
        $region39: #{tpu_custom_call.1} parent=23 // pred_region
          %p266 = scmp.lt.s32.totalorder %s15, 7
          %s267 = scalar_select %p266, %s15, 7
          %s268 = scalar_lea.vmem %s5, %s267
        $region40: #{tpu_custom_call.1} parent=23 // pred_fallthru
          _
      $region24: #{tpu_custom_call.1} parent=5 // pred_fallthru
        _
      %p269 = scmp.le.s32.totalorder 1, %s15
      %p270 = scmp.lt.s32.totalorder %s15, 9
      %p271 = pnand %p269, %p270
      %p272 = pneg %p271
      // Predicated region
      $region41: #{tpu_custom_call.1} parent=5 // pred_check
        _
      $region42: #{tpu_custom_call.1} parent=5 // pred_check_branch
        %274 = sbr.rel (%p271) target = $region44
      $region43: #{tpu_custom_call.1} parent=5 // pred_region
        %s275 = ssub.s32 %s15, 1
        %s276 = smul.u32 7, %s20
        %s277 = ssub.s32 50, %s276
        %p278 = scmp.lt.s32.totalorder %s277, 7
        %s279 = scalar_select %p278, %s277, 7
        %s280 = smul.u32 128, %s279
        %p281 = scmp.lt.s32.totalorder %s276, 49
        %s282 = scalar_select %p281, %s276, 49
        %s283 = smul.addr %s282, 8
        %s284 = scalar_lea.vmem %s0, %s283
        %p285 = pneg %p41
        %p286 = pneg %p38
        %p287 = pneg %p62
        %p288 = pneg %p59
        %p289 = pneg %p83
        %p290 = pneg %p80
        %s291 = smul.u32 7, %s20
        %s292 = ssub.s32 50, %s291
        %p293 = scmp.lt.s32.totalorder %s292, 7
        %s294 = scalar_select %p293, %s292, 7
        %s295 = smul.u32 128, %s294
        %p296 = scmp.lt.s32.totalorder %s291, 49
        %s297 = scalar_select %p296, %s291, 49
        %s298 = smul.addr %s297, 8
        %s299 = scalar_lea.vmem %s3, %s298
        %p300 = pneg %p109
        %p301 = pneg %p106
        %s302 = smul.u32 7, %s20
        %s303 = ssub.s32 50, %s302
        %p304 = scmp.lt.s32.totalorder %s303, 7
        %s305 = scalar_select %p304, %s303, 7
        %s306 = smul.u32 128, %s305
        %p307 = scmp.lt.s32.totalorder %s302, 49
        %s308 = scalar_select %p307, %s302, 49
        %s309 = smul.addr %s308, 8
        %s310 = scalar_lea.vmem %s4, %s309
        %p311 = pneg %p135
        %p312 = pneg %p132
        %p313 = scmp.lt.s32.totalorder %s20, 7
        %s314 = scalar_select %p313, %s20, 7
        %s315 = scalar_lea.vmem %s5, %s314
        %p316 = pneg %p161
        %p317 = pneg %p158
        %p318 = pneg %p187
        %p319 = pneg %p184
        %s320 = sand.u32 %s174, 1
        %s321 = scalar_lea.sflag [#allocation3], %s320
        %s322 = sand.u32 %s174, 1
        %s323 = scalar_lea.vmem [#allocation2], %s322
        %s324 = smul.u32 7, %s20
        %s325 = ssub.s32 50, %s324
        %p326 = scmp.lt.s32.totalorder %s325, 7
        %s327 = scalar_select %p326, %s325, 7
        %s328 = smul.u32 128, %s327
        %p329 = scmp.lt.s32.totalorder %s324, 49
        %s330 = scalar_select %p329, %s324, 49
        %s331 = smul.addr %s330, 8
        %s332 = scalar_lea.vmem %s0, %s331
        %s333 = smul.u32 7, %s20
        %s334 = ssub.s32 50, %s333
        %p335 = scmp.lt.s32.totalorder %s334, 7
        %s336 = scalar_select %p335, %s334, 7
        %s337 = smul.u32 128, %s336
        %s338 = smul.u32 7, %s20
        %s339 = ssub.s32 50, %s338
        %p340 = scmp.lt.s32.totalorder %s339, 7
        %s341 = scalar_select %p340, %s339, 7
        %s342 = smul.u32 128, %s341
        %p343 = scmp.lt.s32.totalorder %s338, 49
        %s344 = scalar_select %p343, %s338, 49
        %s345 = smul.addr %s344, 8
        %s346 = scalar_lea.vmem %s3, %s345
        %s347 = smul.u32 7, %s20
        %s348 = ssub.s32 50, %s347
        %p349 = scmp.lt.s32.totalorder %s348, 7
        %s350 = scalar_select %p349, %s348, 7
        %s351 = smul.u32 128, %s350
        %s352 = smul.u32 7, %s20
        %s353 = ssub.s32 50, %s352
        %p354 = scmp.lt.s32.totalorder %s353, 7
        %s355 = scalar_select %p354, %s353, 7
        %s356 = smul.u32 128, %s355
        %p357 = scmp.lt.s32.totalorder %s352, 49
        %s358 = scalar_select %p357, %s352, 49
        %s359 = smul.addr %s358, 8
        %s360 = scalar_lea.vmem %s4, %s359
        %s361 = smul.u32 7, %s20
        %s362 = ssub.s32 50, %s361
        %p363 = scmp.lt.s32.totalorder %s362, 7
        %s364 = scalar_select %p363, %s362, 7
        %s365 = smul.u32 128, %s364
        %p366 = scmp.lt.s32.totalorder %s20, 7
        %s367 = scalar_select %p366, %s20, 7
        %s368 = scalar_lea.vmem %s5, %s367
        %v369 = vld [vmem:[%s332] sm:$0xff]
        %v370 = vld [vmem:[%s332 + $0x8] sm:$0xff]
        %v371 = vld [vmem:[%s332 + $0x10] sm:$0xff]
        %v372 = vld [vmem:[%s332 + $0x18] sm:$0xff]
        %v373 = vld [vmem:[%s332 + $0x20] sm:$0xff]
        %v374 = vld [vmem:[%s332 + $0x28] sm:$0xff]
        %v375 = vld [vmem:[%s332 + $0x30] sm:$0xff]
        %v376 = vld [vmem:[%s1] sm:$0xff]
        %v377 = vld [vmem:[%s1 + $0x8] sm:$0xff]
        %vm378 = vcmask 130048
        %v380 = vsel %vm378, %v369, 0
        %v383 = vsel %vm378, %v370, 0
        %v386 = vsel %vm378, %v371, 0
        %v389 = vsel %vm378, %v372, 0
        %v392 = vsel %vm378, %v373, 0
        %v395 = vsel %vm378, %v374, 0
        %v398 = vsel %vm378, %v375, 0
        %400 = vmatprep.subr.mxu0 0.0
        %v401 = vand.u32 %v376, 4294901760
        %402 = vmatpush1.msra.mxu0 %v401
        %403 = vmatprep.subr.mxu0 0.0
        %v404 = vand.u32 %v377, 4294901760
        %405 = vmatpush1.msra.mxu0 %v404
        %406 = vmatprep.subr.mxu0 0.0
        %407 = vmatpush1.msra.mxu0 0.0
        %408 = vmatprep.subr.mxu0 0.0
        %409 = vmatpush1.msra.mxu0 0.0
        %410 = vmatprep.subr.mxu0 0.0
        %411 = vmatpush1.msra.mxu0 0.0
        %412 = vmatprep.subr.mxu0 0.0
        %413 = vmatpush1.msra.mxu0 0.0
        %414 = vmatprep.subr.mxu0 0.0
        %415 = vmatpush1.msra.mxu0 0.0
        %416 = vmatprep.subr.mxu0 0.0
        %417 = vmatpush1.msra.mxu0 0.0
        %418 = vmatprep.subr.mxu0 0.0
        %419 = vmatpush1.msra.mxu0 0.0
        %420 = vmatprep.subr.mxu0 0.0
        %421 = vmatpush1.msra.mxu0 0.0
        %422 = vmatprep.subr.mxu0 0.0
        %423 = vmatpush1.msra.mxu0 0.0
        %424 = vmatprep.subr.mxu0 0.0
        %425 = vmatpush1.msra.mxu0 0.0
        %426 = vmatprep.subr.mxu0 0.0
        %427 = vmatpush1.msra.mxu0 0.0
        %428 = vmatprep.subr.mxu0 0.0
        %429 = vmatpush1.msra.mxu0 0.0
        %430 = vmatprep.subr.mxu0 0.0
        %431 = vmatpush1.msra.mxu0 0.0
        %432 = vmatprep.subr.mxu0 0.0
        %433 = vmatpush1.msra.mxu0 0.0
        %434 = vmatprep.subr.mxu0 0.0
        %435 = vmatpush1.msra.mxu0 0.0
        %436 = vmatprep.subr.mxu0 0.0
        %437 = vmatpush1.msra.mxu0 0.0
        %438 = vmatprep.subr.mxu0 0.0
        %439 = vmatpush1.msra.mxu0 0.0
        %440 = vmatprep.subr.mxu0 0.0
        %441 = vmatpush1.msra.mxu0 0.0
        %442 = vmatprep.subr.mxu0 0.0
        %443 = vmatpush1.msra.mxu0 0.0
        %444 = vmatprep.subr.mxu0 0.0
        %445 = vmatpush1.msra.mxu0 0.0
        %446 = vmatprep.subr.mxu0 0.0
        %447 = vmatpush1.msra.mxu0 0.0
        %448 = vmatprep.subr.mxu0 0.0
        %449 = vmatpush1.msra.mxu0 0.0
        %450 = vmatprep.subr.mxu0 0.0
        %451 = vmatpush1.msra.mxu0 0.0
        %452 = vmatprep.subr.mxu0 0.0
        %453 = vmatpush1.msra.mxu0 0.0
        %454 = vmatprep.subr.mxu0 0.0
        %455 = vmatpush1.msra.mxu0 0.0
        %456 = vmatprep.subr.mxu0 0.0
        %457 = vmatpush1.msra.mxu0 0.0
        %458 = vmatprep.subr.mxu0 0.0
        %459 = vmatpush1.msra.mxu0 0.0
        %460 = vmatprep.subr.mxu0 0.0
        %461 = vmatpush1.msra.mxu0 0.0
        %462 = vmatprep.subr.mxu0 0.0
        %463 = vmatpush1.msra.mxu0 0.0
        %464 = vmatprep.subr.mxu0 0.0
        %465 = vmatpush1.msra.mxu0 0.0
        %466 = vmatprep.mubr.f32.mxu0 0.0
        %v467 = vand.u32 %v380, 4294901760
        %v468 = vsub.f32 %v380, %v467
        %v469 = vand.u32 %v468, 4294901760
        %v470 = vsub.f32 %v468, %v469
        %v471 = vand.u32 %v470, 4294901760
        %472 = vmatmul.mubr.f32.gmra.mrb[0].mxu0 %v471
        %v473 = vpop.f32.mrb[0].mxu0
        %v474 = vadd.f32 0.0, %v473
        %v475 = vpop.f32.mrb[0].mxu0
        %476 = vmatprep.mubr.f32.mxu0 0.0
        %v477 = vand.u32 %v383, 4294901760
        %v478 = vsub.f32 %v383, %v477
        %v479 = vand.u32 %v478, 4294901760
        %v480 = vsub.f32 %v478, %v479
        %v481 = vand.u32 %v480, 4294901760
        %482 = vmatmul.mubr.f32.gmra.mrb[0].mxu0 %v481
        %v483 = vpop.f32.mrb[0].mxu0
        %v484 = vadd.f32 0.0, %v483
        %v485 = vpop.f32.mrb[0].mxu0
        %486 = vmatprep.mubr.f32.mxu0 0.0
        %v487 = vand.u32 %v386, 4294901760
        %v488 = vsub.f32 %v386, %v487
        %v489 = vand.u32 %v488, 4294901760
        %v490 = vsub.f32 %v488, %v489
        %v491 = vand.u32 %v490, 4294901760
        %492 = vmatmul.mubr.f32.gmra.mrb[0].mxu0 %v491
        %v493 = vpop.f32.mrb[0].mxu0
        %v494 = vadd.f32 0.0, %v493
        %v495 = vpop.f32.mrb[0].mxu0
        %496 = vmatprep.mubr.f32.mxu0 0.0
        %v497 = vand.u32 %v389, 4294901760
        %v498 = vsub.f32 %v389, %v497
        %v499 = vand.u32 %v498, 4294901760
        %v500 = vsub.f32 %v498, %v499
        %v501 = vand.u32 %v500, 4294901760
        %502 = vmatmul.mubr.f32.gmra.mrb[0].mxu0 %v501
        %v503 = vpop.f32.mrb[0].mxu0
        %v504 = vadd.f32 0.0, %v503
        %v505 = vpop.f32.mrb[0].mxu0
        %506 = vmatprep.mubr.f32.mxu0 0.0
        %v507 = vand.u32 %v392, 4294901760
        %v508 = vsub.f32 %v392, %v507
        %v509 = vand.u32 %v508, 4294901760
        %v510 = vsub.f32 %v508, %v509
        %v511 = vand.u32 %v510, 4294901760
        %512 = vmatmul.mubr.f32.gmra.mrb[0].mxu0 %v511
        %v513 = vpop.f32.mrb[0].mxu0
        %v514 = vadd.f32 0.0, %v513
        %v515 = vpop.f32.mrb[0].mxu0
        %516 = vmatprep.mubr.f32.mxu0 0.0
        %v517 = vand.u32 %v395, 4294901760
        %v518 = vsub.f32 %v395, %v517
        %v519 = vand.u32 %v518, 4294901760
        %v520 = vsub.f32 %v518, %v519
        %v521 = vand.u32 %v520, 4294901760
        %522 = vmatmul.mubr.f32.gmra.mrb[0].mxu0 %v521
        %v523 = vpop.f32.mrb[0].mxu0
        %v524 = vadd.f32 0.0, %v523
        %v525 = vpop.f32.mrb[0].mxu0
        %526 = vmatprep.mubr.f32.mxu0 0.0
        %v527 = vand.u32 %v398, 4294901760
        %v528 = vsub.f32 %v398, %v527
        %v529 = vand.u32 %v528, 4294901760
        %v530 = vsub.f32 %v528, %v529
        %v531 = vand.u32 %v530, 4294901760
        %532 = vmatmul.mubr.f32.gmra.mrb[0].mxu0 %v531
        %v533 = vpop.f32.mrb[0].mxu0
        %v534 = vadd.f32 0.0, %v533
        %v535 = vpop.f32.mrb[0].mxu0
        %536 = vdwg.mxu0
        %537 = vmatprep.subr.mxu0 0.0
        %v538 = vand.u32 %v376, 4294901760
        %v539 = vsub.f32 %v376, %v538
        %v540 = vand.u32 %v539, 4294901760
        %v541 = vsub.f32 %v539, %v540
        %v542 = vand.u32 %v541, 4294901760
        %543 = vmatpush1.msra.mxu0 %v542
        %544 = vmatprep.subr.mxu0 0.0
        %v545 = vand.u32 %v377, 4294901760
        %v546 = vsub.f32 %v377, %v545
        %v547 = vand.u32 %v546, 4294901760
        %v548 = vsub.f32 %v546, %v547
        %v549 = vand.u32 %v548, 4294901760
        %550 = vmatpush1.msra.mxu0 %v549
        %551 = vmatprep.subr.mxu0 0.0
        %552 = vmatpush1.msra.mxu0 0.0
        %553 = vmatprep.subr.mxu0 0.0
        %554 = vmatpush1.msra.mxu0 0.0
        %555 = vmatprep.subr.mxu0 0.0
        %556 = vmatpush1.msra.mxu0 0.0
        %557 = vmatprep.subr.mxu0 0.0
        %558 = vmatpush1.msra.mxu0 0.0
        %559 = vmatprep.subr.mxu0 0.0
        %560 = vmatpush1.msra.mxu0 0.0
        %561 = vmatprep.subr.mxu0 0.0
        %562 = vmatpush1.msra.mxu0 0.0
        %563 = vmatprep.subr.mxu0 0.0
        %564 = vmatpush1.msra.mxu0 0.0
        %565 = vmatprep.subr.mxu0 0.0
        %566 = vmatpush1.msra.mxu0 0.0
        %567 = vmatprep.subr.mxu0 0.0
        %568 = vmatpush1.msra.mxu0 0.0
        %569 = vmatprep.subr.mxu0 0.0
        %570 = vmatpush1.msra.mxu0 0.0
        %571 = vmatprep.subr.mxu0 0.0
        %572 = vmatpush1.msra.mxu0 0.0
        %573 = vmatprep.subr.mxu0 0.0
        %574 = vmatpush1.msra.mxu0 0.0
        %575 = vmatprep.subr.mxu0 0.0
        %576 = vmatpush1.msra.mxu0 0.0
        %577 = vmatprep.subr.mxu0 0.0
        %578 = vmatpush1.msra.mxu0 0.0
        %579 = vmatprep.subr.mxu0 0.0
        %580 = vmatpush1.msra.mxu0 0.0
        %581 = vmatprep.subr.mxu0 0.0
        %582 = vmatpush1.msra.mxu0 0.0
        %583 = vmatprep.subr.mxu0 0.0
        %584 = vmatpush1.msra.mxu0 0.0
        %585 = vmatprep.subr.mxu0 0.0
        %586 = vmatpush1.msra.mxu0 0.0
        %587 = vmatprep.subr.mxu0 0.0
        %588 = vmatpush1.msra.mxu0 0.0
        %589 = vmatprep.subr.mxu0 0.0
        %590 = vmatpush1.msra.mxu0 0.0
        %591 = vmatprep.subr.mxu0 0.0
        %592 = vmatpush1.msra.mxu0 0.0
        %593 = vmatprep.subr.mxu0 0.0
        %594 = vmatpush1.msra.mxu0 0.0
        %595 = vmatprep.subr.mxu0 0.0
        %596 = vmatpush1.msra.mxu0 0.0
        %597 = vmatprep.subr.mxu0 0.0
        %598 = vmatpush1.msra.mxu0 0.0
        %599 = vmatprep.subr.mxu0 0.0
        %600 = vmatpush1.msra.mxu0 0.0
        %601 = vmatprep.subr.mxu0 0.0
        %602 = vmatpush1.msra.mxu0 0.0
        %603 = vmatprep.subr.mxu0 0.0
        %604 = vmatpush1.msra.mxu0 0.0
        %605 = vmatprep.subr.mxu0 0.0
        %606 = vmatpush1.msra.mxu0 0.0
        %607 = vmatprep.subr.mxu0 0.0
        %608 = vmatpush1.msra.mxu0 0.0
        %609 = vmatprep.subr.mxu0 0.0
        %610 = vmatpush1.msra.mxu0 0.0
        %611 = vmatprep.mubr.f32.mxu0 0.0
        %v612 = vand.u32 %v380, 4294901760
        %613 = vmatmul.mubr.f32.gmra.mrb[0].mxu0 %v612
        %v614 = vpop.f32.mrb[0].mxu0
        %v615 = vadd.f32 %v474, %v614
        %v616 = vpop.f32.mrb[0].mxu0
        %617 = vmatprep.mubr.f32.mxu0 0.0
        %v618 = vand.u32 %v383, 4294901760
        %619 = vmatmul.mubr.f32.gmra.mrb[0].mxu0 %v618
        %v620 = vpop.f32.mrb[0].mxu0
        %v621 = vadd.f32 %v484, %v620
        %v622 = vpop.f32.mrb[0].mxu0
        %623 = vmatprep.mubr.f32.mxu0 0.0
        %v624 = vand.u32 %v386, 4294901760
        %625 = vmatmul.mubr.f32.gmra.mrb[0].mxu0 %v624
        %v626 = vpop.f32.mrb[0].mxu0
        %v627 = vadd.f32 %v494, %v626
        %v628 = vpop.f32.mrb[0].mxu0
        %629 = vmatprep.mubr.f32.mxu0 0.0
        %v630 = vand.u32 %v389, 4294901760
        %631 = vmatmul.mubr.f32.gmra.mrb[0].mxu0 %v630
        %v632 = vpop.f32.mrb[0].mxu0
        %v633 = vadd.f32 %v504, %v632
        %v634 = vpop.f32.mrb[0].mxu0
        %635 = vmatprep.mubr.f32.mxu0 0.0
        %v636 = vand.u32 %v392, 4294901760
        %637 = vmatmul.mubr.f32.gmra.mrb[0].mxu0 %v636
        %v638 = vpop.f32.mrb[0].mxu0
        %v639 = vadd.f32 %v514, %v638
        %v640 = vpop.f32.mrb[0].mxu0
        %641 = vmatprep.mubr.f32.mxu0 0.0
        %v642 = vand.u32 %v395, 4294901760
        %643 = vmatmul.mubr.f32.gmra.mrb[0].mxu0 %v642
        %v644 = vpop.f32.mrb[0].mxu0
        %v645 = vadd.f32 %v524, %v644
        %v646 = vpop.f32.mrb[0].mxu0
        %647 = vmatprep.mubr.f32.mxu0 0.0
        %v648 = vand.u32 %v398, 4294901760
        %649 = vmatmul.mubr.f32.gmra.mrb[0].mxu0 %v648
        %v650 = vpop.f32.mrb[0].mxu0
        %v651 = vadd.f32 %v534, %v650
        %v652 = vpop.f32.mrb[0].mxu0
        %653 = vdwg.mxu0
        %654 = vmatprep.subr.mxu0 0.0
        %v655 = vand.u32 %v376, 4294901760
        %v656 = vsub.f32 %v376, %v655
        %657 = vmatpush1.msra.mxu0 %v656
        %658 = vmatprep.subr.mxu0 0.0
        %v659 = vand.u32 %v377, 4294901760
        %v660 = vsub.f32 %v377, %v659
        %661 = vmatpush1.msra.mxu0 %v660
        %662 = vmatprep.subr.mxu0 0.0
        %663 = vmatpush1.msra.mxu0 0.0
        %664 = vmatprep.subr.mxu0 0.0
        %665 = vmatpush1.msra.mxu0 0.0
        %666 = vmatprep.subr.mxu0 0.0
        %667 = vmatpush1.msra.mxu0 0.0
        %668 = vmatprep.subr.mxu0 0.0
        %669 = vmatpush1.msra.mxu0 0.0
        %670 = vmatprep.subr.mxu0 0.0
        %671 = vmatpush1.msra.mxu0 0.0
        %672 = vmatprep.subr.mxu0 0.0
        %673 = vmatpush1.msra.mxu0 0.0
        %674 = vmatprep.subr.mxu0 0.0
        %675 = vmatpush1.msra.mxu0 0.0
        %676 = vmatprep.subr.mxu0 0.0
        %677 = vmatpush1.msra.mxu0 0.0
        %678 = vmatprep.subr.mxu0 0.0
        %679 = vmatpush1.msra.mxu0 0.0
        %680 = vmatprep.subr.mxu0 0.0
        %681 = vmatpush1.msra.mxu0 0.0
        %682 = vmatprep.subr.mxu0 0.0
        %683 = vmatpush1.msra.mxu0 0.0
        %684 = vmatprep.subr.mxu0 0.0
        %685 = vmatpush1.msra.mxu0 0.0
        %686 = vmatprep.subr.mxu0 0.0
        %687 = vmatpush1.msra.mxu0 0.0
        %688 = vmatprep.subr.mxu0 0.0
        %689 = vmatpush1.msra.mxu0 0.0
        %690 = vmatprep.subr.mxu0 0.0
        %691 = vmatpush1.msra.mxu0 0.0
        %692 = vmatprep.subr.mxu0 0.0
        %693 = vmatpush1.msra.mxu0 0.0
        %694 = vmatprep.subr.mxu0 0.0
        %695 = vmatpush1.msra.mxu0 0.0
        %696 = vmatprep.subr.mxu0 0.0
        %697 = vmatpush1.msra.mxu0 0.0
        %698 = vmatprep.subr.mxu0 0.0
        %699 = vmatpush1.msra.mxu0 0.0
        %700 = vmatprep.subr.mxu0 0.0
        %701 = vmatpush1.msra.mxu0 0.0
        %702 = vmatprep.subr.mxu0 0.0
        %703 = vmatpush1.msra.mxu0 0.0
        %704 = vmatprep.subr.mxu0 0.0
        %705 = vmatpush1.msra.mxu0 0.0
        %706 = vmatprep.subr.mxu0 0.0
        %707 = vmatpush1.msra.mxu0 0.0
        %708 = vmatprep.subr.mxu0 0.0
        %709 = vmatpush1.msra.mxu0 0.0
        %710 = vmatprep.subr.mxu0 0.0
        %711 = vmatpush1.msra.mxu0 0.0
        %712 = vmatprep.subr.mxu0 0.0
        %713 = vmatpush1.msra.mxu0 0.0
        %714 = vmatprep.subr.mxu0 0.0
        %715 = vmatpush1.msra.mxu0 0.0
        %716 = vmatprep.subr.mxu0 0.0
        %717 = vmatpush1.msra.mxu0 0.0
        %718 = vmatprep.subr.mxu0 0.0
        %719 = vmatpush1.msra.mxu0 0.0
        %720 = vmatprep.subr.mxu0 0.0
        %721 = vmatpush1.msra.mxu0 0.0
        %722 = vmatprep.mubr.f32.mxu0 0.0
        %v723 = vand.u32 %v380, 4294901760
        %v724 = vsub.f32 %v380, %v723
        %725 = vmatmul.mubr.f32.gmra.mrb[0].mxu0 %v724
        %v726 = vpop.f32.mrb[0].mxu0
        %v727 = vadd.f32 %v615, %v726
        %v728 = vpop.f32.mrb[0].mxu0
        %729 = vmatprep.mubr.f32.mxu0 0.0
        %v730 = vand.u32 %v383, 4294901760
        %v731 = vsub.f32 %v383, %v730
        %732 = vmatmul.mubr.f32.gmra.mrb[0].mxu0 %v731
        %v733 = vpop.f32.mrb[0].mxu0
        %v734 = vadd.f32 %v621, %v733
        %v735 = vpop.f32.mrb[0].mxu0
        %736 = vmatprep.mubr.f32.mxu0 0.0
        %v737 = vand.u32 %v386, 4294901760
        %v738 = vsub.f32 %v386, %v737
        %739 = vmatmul.mubr.f32.gmra.mrb[0].mxu0 %v738
        %v740 = vpop.f32.mrb[0].mxu0
        %v741 = vadd.f32 %v627, %v740
        %v742 = vpop.f32.mrb[0].mxu0
        %743 = vmatprep.mubr.f32.mxu0 0.0
        %v744 = vand.u32 %v389, 4294901760
        %v745 = vsub.f32 %v389, %v744
        %746 = vmatmul.mubr.f32.gmra.mrb[0].mxu0 %v745
        %v747 = vpop.f32.mrb[0].mxu0
        %v748 = vadd.f32 %v633, %v747
        %v749 = vpop.f32.mrb[0].mxu0
        %750 = vmatprep.mubr.f32.mxu0 0.0
        %v751 = vand.u32 %v392, 4294901760
        %v752 = vsub.f32 %v392, %v751
        %753 = vmatmul.mubr.f32.gmra.mrb[0].mxu0 %v752
        %v754 = vpop.f32.mrb[0].mxu0
        %v755 = vadd.f32 %v639, %v754
        %v756 = vpop.f32.mrb[0].mxu0
        %757 = vmatprep.mubr.f32.mxu0 0.0
        %v758 = vand.u32 %v395, 4294901760
        %v759 = vsub.f32 %v395, %v758
        %760 = vmatmul.mubr.f32.gmra.mrb[0].mxu0 %v759
        %v761 = vpop.f32.mrb[0].mxu0
        %v762 = vadd.f32 %v645, %v761
        %v763 = vpop.f32.mrb[0].mxu0
        %764 = vmatprep.mubr.f32.mxu0 0.0
        %v765 = vand.u32 %v398, 4294901760
        %v766 = vsub.f32 %v398, %v765
        %767 = vmatmul.mubr.f32.gmra.mrb[0].mxu0 %v766
        %v768 = vpop.f32.mrb[0].mxu0
        %v769 = vadd.f32 %v651, %v768
        %v770 = vpop.f32.mrb[0].mxu0
        %771 = vdwg.mxu0
        %772 = vmatprep.subr.mxu0 0.0
        %v773 = vand.u32 %v376, 4294901760
        %774 = vmatpush1.msra.mxu0 %v773
        %775 = vmatprep.subr.mxu0 0.0
        %v776 = vand.u32 %v377, 4294901760
        %777 = vmatpush1.msra.mxu0 %v776
        %778 = vmatprep.subr.mxu0 0.0
        %779 = vmatpush1.msra.mxu0 0.0
        %780 = vmatprep.subr.mxu0 0.0
        %781 = vmatpush1.msra.mxu0 0.0
        %782 = vmatprep.subr.mxu0 0.0
        %783 = vmatpush1.msra.mxu0 0.0
        %784 = vmatprep.subr.mxu0 0.0
        %785 = vmatpush1.msra.mxu0 0.0
        %786 = vmatprep.subr.mxu0 0.0
        %787 = vmatpush1.msra.mxu0 0.0
        %788 = vmatprep.subr.mxu0 0.0
        %789 = vmatpush1.msra.mxu0 0.0
        %790 = vmatprep.subr.mxu0 0.0
        %791 = vmatpush1.msra.mxu0 0.0
        %792 = vmatprep.subr.mxu0 0.0
        %793 = vmatpush1.msra.mxu0 0.0
        %794 = vmatprep.subr.mxu0 0.0
        %795 = vmatpush1.msra.mxu0 0.0
        %796 = vmatprep.subr.mxu0 0.0
        %797 = vmatpush1.msra.mxu0 0.0
        %798 = vmatprep.subr.mxu0 0.0
        %799 = vmatpush1.msra.mxu0 0.0
        %800 = vmatprep.subr.mxu0 0.0
        %801 = vmatpush1.msra.mxu0 0.0
        %802 = vmatprep.subr.mxu0 0.0
        %803 = vmatpush1.msra.mxu0 0.0
        %804 = vmatprep.subr.mxu0 0.0
        %805 = vmatpush1.msra.mxu0 0.0
        %806 = vmatprep.subr.mxu0 0.0
        %807 = vmatpush1.msra.mxu0 0.0
        %808 = vmatprep.subr.mxu0 0.0
        %809 = vmatpush1.msra.mxu0 0.0
        %810 = vmatprep.subr.mxu0 0.0
        %811 = vmatpush1.msra.mxu0 0.0
        %812 = vmatprep.subr.mxu0 0.0
        %813 = vmatpush1.msra.mxu0 0.0
        %814 = vmatprep.subr.mxu0 0.0
        %815 = vmatpush1.msra.mxu0 0.0
        %816 = vmatprep.subr.mxu0 0.0
        %817 = vmatpush1.msra.mxu0 0.0
        %818 = vmatprep.subr.mxu0 0.0
        %819 = vmatpush1.msra.mxu0 0.0
        %820 = vmatprep.subr.mxu0 0.0
        %821 = vmatpush1.msra.mxu0 0.0
        %822 = vmatprep.subr.mxu0 0.0
        %823 = vmatpush1.msra.mxu0 0.0
        %824 = vmatprep.subr.mxu0 0.0
        %825 = vmatpush1.msra.mxu0 0.0
        %826 = vmatprep.subr.mxu0 0.0
        %827 = vmatpush1.msra.mxu0 0.0
        %828 = vmatprep.subr.mxu0 0.0
        %829 = vmatpush1.msra.mxu0 0.0
        %830 = vmatprep.subr.mxu0 0.0
        %831 = vmatpush1.msra.mxu0 0.0
        %832 = vmatprep.subr.mxu0 0.0
        %833 = vmatpush1.msra.mxu0 0.0
        %834 = vmatprep.subr.mxu0 0.0
        %835 = vmatpush1.msra.mxu0 0.0
        %836 = vmatprep.subr.mxu0 0.0
        %837 = vmatpush1.msra.mxu0 0.0
        %838 = vmatprep.mubr.f32.mxu0 0.0
        %v839 = vand.u32 %v380, 4294901760
        %v840 = vsub.f32 %v380, %v839
        %v841 = vand.u32 %v840, 4294901760
        %842 = vmatmul.mubr.f32.gmra.mrb[0].mxu0 %v841
        %v843 = vpop.f32.mrb[0].mxu0
        %v844 = vadd.f32 %v727, %v843
        %v845 = vpop.f32.mrb[0].mxu0
        %846 = vmatprep.mubr.f32.mxu0 0.0
        %v847 = vand.u32 %v383, 4294901760
        %v848 = vsub.f32 %v383, %v847
        %v849 = vand.u32 %v848, 4294901760
        %850 = vmatmul.mubr.f32.gmra.mrb[0].mxu0 %v849
        %v851 = vpop.f32.mrb[0].mxu0
        %v852 = vadd.f32 %v734, %v851
        %v853 = vpop.f32.mrb[0].mxu0
        %854 = vmatprep.mubr.f32.mxu0 0.0
        %v855 = vand.u32 %v386, 4294901760
        %v856 = vsub.f32 %v386, %v855
        %v857 = vand.u32 %v856, 4294901760
        %858 = vmatmul.mubr.f32.gmra.mrb[0].mxu0 %v857
        %v859 = vpop.f32.mrb[0].mxu0
        %v860 = vadd.f32 %v741, %v859
        %v861 = vpop.f32.mrb[0].mxu0
        %862 = vmatprep.mubr.f32.mxu0 0.0
        %v863 = vand.u32 %v389, 4294901760
        %v864 = vsub.f32 %v389, %v863
        %v865 = vand.u32 %v864, 4294901760
        %866 = vmatmul.mubr.f32.gmra.mrb[0].mxu0 %v865
        %v867 = vpop.f32.mrb[0].mxu0
        %v868 = vadd.f32 %v748, %v867
        %v869 = vpop.f32.mrb[0].mxu0
        %870 = vmatprep.mubr.f32.mxu0 0.0
        %v871 = vand.u32 %v392, 4294901760
        %v872 = vsub.f32 %v392, %v871
        %v873 = vand.u32 %v872, 4294901760
        %874 = vmatmul.mubr.f32.gmra.mrb[0].mxu0 %v873
        %v875 = vpop.f32.mrb[0].mxu0
        %v876 = vadd.f32 %v755, %v875
        %v877 = vpop.f32.mrb[0].mxu0
        %878 = vmatprep.mubr.f32.mxu0 0.0
        %v879 = vand.u32 %v395, 4294901760
        %v880 = vsub.f32 %v395, %v879
        %v881 = vand.u32 %v880, 4294901760
        %882 = vmatmul.mubr.f32.gmra.mrb[0].mxu0 %v881
        %v883 = vpop.f32.mrb[0].mxu0
        %v884 = vadd.f32 %v762, %v883
        %v885 = vpop.f32.mrb[0].mxu0
        %886 = vmatprep.mubr.f32.mxu0 0.0
        %v887 = vand.u32 %v398, 4294901760
        %v888 = vsub.f32 %v398, %v887
        %v889 = vand.u32 %v888, 4294901760
        %890 = vmatmul.mubr.f32.gmra.mrb[0].mxu0 %v889
        %v891 = vpop.f32.mrb[0].mxu0
        %v892 = vadd.f32 %v769, %v891
        %v893 = vpop.f32.mrb[0].mxu0
        %894 = vdwg.mxu0
        %895 = vmatprep.subr.mxu0 0.0
        %v896 = vand.u32 %v376, 4294901760
        %v897 = vsub.f32 %v376, %v896
        %v898 = vand.u32 %v897, 4294901760
        %899 = vmatpush1.msra.mxu0 %v898
        %900 = vmatprep.subr.mxu0 0.0
        %v901 = vand.u32 %v377, 4294901760
        %v902 = vsub.f32 %v377, %v901
        %v903 = vand.u32 %v902, 4294901760
        %904 = vmatpush1.msra.mxu0 %v903
        %905 = vmatprep.subr.mxu0 0.0
        %906 = vmatpush1.msra.mxu0 0.0
        %907 = vmatprep.subr.mxu0 0.0
        %908 = vmatpush1.msra.mxu0 0.0
        %909 = vmatprep.subr.mxu0 0.0
        %910 = vmatpush1.msra.mxu0 0.0
        %911 = vmatprep.subr.mxu0 0.0
        %912 = vmatpush1.msra.mxu0 0.0
        %913 = vmatprep.subr.mxu0 0.0
        %914 = vmatpush1.msra.mxu0 0.0
        %915 = vmatprep.subr.mxu0 0.0
        %916 = vmatpush1.msra.mxu0 0.0
        %917 = vmatprep.subr.mxu0 0.0
        %918 = vmatpush1.msra.mxu0 0.0
        %919 = vmatprep.subr.mxu0 0.0
        %920 = vmatpush1.msra.mxu0 0.0
        %921 = vmatprep.subr.mxu0 0.0
        %922 = vmatpush1.msra.mxu0 0.0
        %923 = vmatprep.subr.mxu0 0.0
        %924 = vmatpush1.msra.mxu0 0.0
        %925 = vmatprep.subr.mxu0 0.0
        %926 = vmatpush1.msra.mxu0 0.0
        %927 = vmatprep.subr.mxu0 0.0
        %928 = vmatpush1.msra.mxu0 0.0
        %929 = vmatprep.subr.mxu0 0.0
        %930 = vmatpush1.msra.mxu0 0.0
        %931 = vmatprep.subr.mxu0 0.0
        %932 = vmatpush1.msra.mxu0 0.0
        %933 = vmatprep.subr.mxu0 0.0
        %934 = vmatpush1.msra.mxu0 0.0
        %935 = vmatprep.subr.mxu0 0.0
        %936 = vmatpush1.msra.mxu0 0.0
        %937 = vmatprep.subr.mxu0 0.0
        %938 = vmatpush1.msra.mxu0 0.0
        %939 = vmatprep.subr.mxu0 0.0
        %940 = vmatpush1.msra.mxu0 0.0
        %941 = vmatprep.subr.mxu0 0.0
        %942 = vmatpush1.msra.mxu0 0.0
        %943 = vmatprep.subr.mxu0 0.0
        %944 = vmatpush1.msra.mxu0 0.0
        %945 = vmatprep.subr.mxu0 0.0
        %946 = vmatpush1.msra.mxu0 0.0
        %947 = vmatprep.subr.mxu0 0.0
        %948 = vmatpush1.msra.mxu0 0.0
        %949 = vmatprep.subr.mxu0 0.0
        %950 = vmatpush1.msra.mxu0 0.0
        %951 = vmatprep.subr.mxu0 0.0
        %952 = vmatpush1.msra.mxu0 0.0
        %953 = vmatprep.subr.mxu0 0.0
        %954 = vmatpush1.msra.mxu0 0.0
        %955 = vmatprep.subr.mxu0 0.0
        %956 = vmatpush1.msra.mxu0 0.0
        %957 = vmatprep.subr.mxu0 0.0
        %958 = vmatpush1.msra.mxu0 0.0
        %959 = vmatprep.subr.mxu0 0.0
        %960 = vmatpush1.msra.mxu0 0.0
        %961 = vmatprep.subr.mxu0 0.0
        %962 = vmatpush1.msra.mxu0 0.0
        %963 = vmatprep.subr.mxu0 0.0
        %964 = vmatpush1.msra.mxu0 0.0
        %965 = vmatprep.mubr.f32.mxu0 0.0
        %v966 = vand.u32 %v380, 4294901760
        %967 = vmatmul.mubr.f32.gmra.mrb[0].mxu0 %v966
        %v968 = vpop.f32.mrb[0].mxu0
        %v969 = vadd.f32 %v844, %v968
        %v970 = vpop.f32.mrb[0].mxu0
        %971 = vmatprep.mubr.f32.mxu0 0.0
        %v972 = vand.u32 %v383, 4294901760
        %973 = vmatmul.mubr.f32.gmra.mrb[0].mxu0 %v972
        %v974 = vpop.f32.mrb[0].mxu0
        %v975 = vadd.f32 %v852, %v974
        %v976 = vpop.f32.mrb[0].mxu0
        %977 = vmatprep.mubr.f32.mxu0 0.0
        %v978 = vand.u32 %v386, 4294901760
        %979 = vmatmul.mubr.f32.gmra.mrb[0].mxu0 %v978
        %v980 = vpop.f32.mrb[0].mxu0
        %v981 = vadd.f32 %v860, %v980
        %v982 = vpop.f32.mrb[0].mxu0
        %983 = vmatprep.mubr.f32.mxu0 0.0
        %v984 = vand.u32 %v389, 4294901760
        %985 = vmatmul.mubr.f32.gmra.mrb[0].mxu0 %v984
        %v986 = vpop.f32.mrb[0].mxu0
        %v987 = vadd.f32 %v868, %v986
        %v988 = vpop.f32.mrb[0].mxu0
        %989 = vmatprep.mubr.f32.mxu0 0.0
        %v990 = vand.u32 %v392, 4294901760
        %991 = vmatmul.mubr.f32.gmra.mrb[0].mxu0 %v990
        %v992 = vpop.f32.mrb[0].mxu0
        %v993 = vadd.f32 %v876, %v992
        %v994 = vpop.f32.mrb[0].mxu0
        %995 = vmatprep.mubr.f32.mxu0 0.0
        %v996 = vand.u32 %v395, 4294901760
        %997 = vmatmul.mubr.f32.gmra.mrb[0].mxu0 %v996
        %v998 = vpop.f32.mrb[0].mxu0
        %v999 = vadd.f32 %v884, %v998
        %v1000 = vpop.f32.mrb[0].mxu0
        %1001 = vmatprep.mubr.f32.mxu0 0.0
        %v1002 = vand.u32 %v398, 4294901760
        %1003 = vmatmul.mubr.f32.gmra.mrb[0].mxu0 %v1002
        %v1004 = vpop.f32.mrb[0].mxu0
        %v1005 = vadd.f32 %v892, %v1004
        %v1006 = vpop.f32.mrb[0].mxu0
        %1007 = vdwg.mxu0
        %1008 = vmatprep.subr.mxu0 0.0
        %v1009 = vand.u32 %v376, 4294901760
        %1010 = vmatpush1.msra.mxu0 %v1009
        %1011 = vmatprep.subr.mxu0 0.0
        %v1012 = vand.u32 %v377, 4294901760
        %1013 = vmatpush1.msra.mxu0 %v1012
        %1014 = vmatprep.subr.mxu0 0.0
        %1015 = vmatpush1.msra.mxu0 0.0
        %1016 = vmatprep.subr.mxu0 0.0
        %1017 = vmatpush1.msra.mxu0 0.0
        %1018 = vmatprep.subr.mxu0 0.0
        %1019 = vmatpush1.msra.mxu0 0.0
        %1020 = vmatprep.subr.mxu0 0.0
        %1021 = vmatpush1.msra.mxu0 0.0
        %1022 = vmatprep.subr.mxu0 0.0
        %1023 = vmatpush1.msra.mxu0 0.0
        %1024 = vmatprep.subr.mxu0 0.0
        %1025 = vmatpush1.msra.mxu0 0.0
        %1026 = vmatprep.subr.mxu0 0.0
        %1027 = vmatpush1.msra.mxu0 0.0
        %1028 = vmatprep.subr.mxu0 0.0
        %1029 = vmatpush1.msra.mxu0 0.0
        %1030 = vmatprep.subr.mxu0 0.0
        %1031 = vmatpush1.msra.mxu0 0.0
        %1032 = vmatprep.subr.mxu0 0.0
        %1033 = vmatpush1.msra.mxu0 0.0
        %1034 = vmatprep.subr.mxu0 0.0
        %1035 = vmatpush1.msra.mxu0 0.0
        %1036 = vmatprep.subr.mxu0 0.0
        %1037 = vmatpush1.msra.mxu0 0.0
        %1038 = vmatprep.subr.mxu0 0.0
        %1039 = vmatpush1.msra.mxu0 0.0
        %1040 = vmatprep.subr.mxu0 0.0
        %1041 = vmatpush1.msra.mxu0 0.0
        %1042 = vmatprep.subr.mxu0 0.0
        %1043 = vmatpush1.msra.mxu0 0.0
        %1044 = vmatprep.subr.mxu0 0.0
        %1045 = vmatpush1.msra.mxu0 0.0
        %1046 = vmatprep.subr.mxu0 0.0
        %1047 = vmatpush1.msra.mxu0 0.0
        %1048 = vmatprep.subr.mxu0 0.0
        %1049 = vmatpush1.msra.mxu0 0.0
        %1050 = vmatprep.subr.mxu0 0.0
        %1051 = vmatpush1.msra.mxu0 0.0
        %1052 = vmatprep.subr.mxu0 0.0
        %1053 = vmatpush1.msra.mxu0 0.0
        %1054 = vmatprep.subr.mxu0 0.0
        %1055 = vmatpush1.msra.mxu0 0.0
        %1056 = vmatprep.subr.mxu0 0.0
        %1057 = vmatpush1.msra.mxu0 0.0
        %1058 = vmatprep.subr.mxu0 0.0
        %1059 = vmatpush1.msra.mxu0 0.0
        %1060 = vmatprep.subr.mxu0 0.0
        %1061 = vmatpush1.msra.mxu0 0.0
        %1062 = vmatprep.subr.mxu0 0.0
        %1063 = vmatpush1.msra.mxu0 0.0
        %1064 = vmatprep.subr.mxu0 0.0
        %1065 = vmatpush1.msra.mxu0 0.0
        %1066 = vmatprep.subr.mxu0 0.0
        %1067 = vmatpush1.msra.mxu0 0.0
        %1068 = vmatprep.subr.mxu0 0.0
        %1069 = vmatpush1.msra.mxu0 0.0
        %1070 = vmatprep.subr.mxu0 0.0
        %1071 = vmatpush1.msra.mxu0 0.0
        %1072 = vmatprep.subr.mxu0 0.0
        %1073 = vmatpush1.msra.mxu0 0.0
        %1074 = vmatprep.mubr.f32.mxu0 0.0
        %v1075 = vand.u32 %v380, 4294901760
        %1076 = vmatmul.mubr.f32.gmra.mrb[0].mxu0 %v1075
        %v1077 = vpop.f32.mrb[0].mxu0
        %v1078 = vadd.f32 %v969, %v1077
        %v1079 = vpop.f32.mrb[0].mxu0
        %1080 = vmatprep.mubr.f32.mxu0 0.0
        %v1081 = vand.u32 %v383, 4294901760
        %1082 = vmatmul.mubr.f32.gmra.mrb[0].mxu0 %v1081
        %v1083 = vpop.f32.mrb[0].mxu0
        %v1084 = vadd.f32 %v975, %v1083
        %v1085 = vpop.f32.mrb[0].mxu0
        %1086 = vmatprep.mubr.f32.mxu0 0.0
        %v1087 = vand.u32 %v386, 4294901760
        %1088 = vmatmul.mubr.f32.gmra.mrb[0].mxu0 %v1087
        %v1089 = vpop.f32.mrb[0].mxu0
        %v1090 = vadd.f32 %v981, %v1089
        %v1091 = vpop.f32.mrb[0].mxu0
        %1092 = vmatprep.mubr.f32.mxu0 0.0
        %v1093 = vand.u32 %v389, 4294901760
        %1094 = vmatmul.mubr.f32.gmra.mrb[0].mxu0 %v1093
        %v1095 = vpop.f32.mrb[0].mxu0
        %v1096 = vadd.f32 %v987, %v1095
        %v1097 = vpop.f32.mrb[0].mxu0
        %1098 = vmatprep.mubr.f32.mxu0 0.0
        %v1099 = vand.u32 %v392, 4294901760
        %1100 = vmatmul.mubr.f32.gmra.mrb[0].mxu0 %v1099
        %v1101 = vpop.f32.mrb[0].mxu0
        %v1102 = vadd.f32 %v993, %v1101
        %v1103 = vpop.f32.mrb[0].mxu0
        %1104 = vmatprep.mubr.f32.mxu0 0.0
        %v1105 = vand.u32 %v395, 4294901760
        %1106 = vmatmul.mubr.f32.gmra.mrb[0].mxu0 %v1105
        %v1107 = vpop.f32.mrb[0].mxu0
        %v1108 = vadd.f32 %v999, %v1107
        %v1109 = vpop.f32.mrb[0].mxu0
        %1110 = vmatprep.mubr.f32.mxu0 0.0
        %v1111 = vand.u32 %v398, 4294901760
        %1112 = vmatmul.mubr.f32.gmra.mrb[0].mxu0 %v1111
        %v1113 = vpop.f32.mrb[0].mxu0
        %v1114 = vadd.f32 %v1005, %v1113
        %v1115 = vpop.f32.mrb[0].mxu0
        %1116 = vdwg.mxu0
        %v1117 = vld [vmem:[%s346] sm:$0xff]
        %v1118 = vld [vmem:[%s346 + $0x8] sm:$0xff]
        %v1119 = vld [vmem:[%s346 + $0x10] sm:$0xff]
        %v1120 = vld [vmem:[%s346 + $0x18] sm:$0xff]
        %v1121 = vld [vmem:[%s346 + $0x20] sm:$0xff]
        %v1122 = vld [vmem:[%s346 + $0x28] sm:$0xff]
        %v1123 = vld [vmem:[%s346 + $0x30] sm:$0xff]
        %v1124 = vadd.f32 %v1117, %v1078
        %v1125 = vadd.f32 %v1118, %v1084
        %v1126 = vadd.f32 %v1119, %v1090
        %v1127 = vadd.f32 %v1120, %v1096
        %v1128 = vadd.f32 %v1121, %v1102
        %v1129 = vadd.f32 %v1122, %v1108
        %v1130 = vadd.f32 %v1123, %v1114
        %v1131 = vld [vmem:[%s2] sm:$0x1]
        %v1133 = vlaneseq
        %v1134 = vshrl.u32 %v1133, 7
        %v1135 = vsub.s32 0, %v1134
        %v1136 = vrot.slane %v1131, %v1135
        %v1138 = vadd.f32 %v1124, %v1136
        %v1139 = vadd.f32 %v1125, %v1136
        %v1140 = vadd.f32 %v1126, %v1136
        %v1141 = vadd.f32 %v1127, %v1136
        %v1142 = vadd.f32 %v1128, %v1136
        %v1143 = vadd.f32 %v1129, %v1136
        %v1144 = vadd.f32 %v1130, %v1136
        %v1145 = vld [vmem:[%s360] sm:$0xff]
        %v1146 = vld [vmem:[%s360 + $0x8] sm:$0xff]
        %v1147 = vld [vmem:[%s360 + $0x10] sm:$0xff]
        %v1148 = vld [vmem:[%s360 + $0x18] sm:$0xff]
        %v1149 = vld [vmem:[%s360 + $0x20] sm:$0xff]
        %v1150 = vld [vmem:[%s360 + $0x28] sm:$0xff]
        %v1151 = vld [vmem:[%s360 + $0x30] sm:$0xff]
        %v1152 = vmax.f32 %v1145, 0.0
        %v1153 = vmax.f32 %v1146, 0.0
        %v1154 = vmax.f32 %v1147, 0.0
        %v1155 = vmax.f32 %v1148, 0.0
        %v1156 = vmax.f32 %v1149, 0.0
        %v1157 = vmax.f32 %v1150, 0.0
        %v1158 = vmax.f32 %v1151, 0.0
        %v1159 = vand.u32 2147483647, %v1145
        %v1160 = vand.u32 2147483647, %v1146
        %v1161 = vand.u32 2147483647, %v1147
        %v1162 = vand.u32 2147483647, %v1148
        %v1163 = vand.u32 2147483647, %v1149
        %v1164 = vand.u32 2147483647, %v1150
        %v1165 = vand.u32 2147483647, %v1151
        %v1166 = vsub.f32 0.0, %v1159
        %v1167 = vsub.f32 0.0, %v1160
        %v1168 = vsub.f32 0.0, %v1161
        %v1169 = vsub.f32 0.0, %v1162
        %v1170 = vsub.f32 0.0, %v1163
        %v1171 = vsub.f32 0.0, %v1164
        %v1172 = vsub.f32 0.0, %v1165
        %v1173 = vmul.f32 %v1166, 1.442695
        %v1174 = vpow.pop %v1173
        %v1175 = vmul.f32 %v1167, 1.442695
        %v1176 = vpow.pop %v1175
        %v1177 = vmul.f32 %v1168, 1.442695
        %v1178 = vpow.pop %v1177
        %v1179 = vmul.f32 %v1169, 1.442695
        %v1180 = vpow.pop %v1179
        %v1181 = vmul.f32 %v1170, 1.442695
        %v1182 = vpow.pop %v1181
        %v1183 = vmul.f32 %v1171, 1.442695
        %v1184 = vpow.pop %v1183
        %v1185 = vmul.f32 %v1172, 1.442695
        %v1186 = vpow.pop %v1185
        %v1187 = vadd.f32 %v1174, 1.0
        %v1188 = vlog2.pop %v1187
        %v1189 = vmul.f32 %v1188, 0.6931472
        %v1190 = vmul.f32 -0.5, %v1174
        %v1191 = vadd.f32 %v1190, 1.0
        %v1192 = vmul.f32 %v1191, %v1174
        %v1193 = vand.u32 2147483647, %v1174
        %vm1194 = vcmp.lt.f32.partialorder %v1193, 0.0004427343
        %v1195 = vsel %vm1194, %v1192, %v1189
        %v1196 = vadd.f32 %v1176, 1.0
        %v1197 = vlog2.pop %v1196
        %v1198 = vmul.f32 %v1197, 0.6931472
        %v1199 = vmul.f32 -0.5, %v1176
        %v1200 = vadd.f32 %v1199, 1.0
        %v1201 = vmul.f32 %v1200, %v1176
        %v1202 = vand.u32 2147483647, %v1176
        %vm1203 = vcmp.lt.f32.partialorder %v1202, 0.0004427343
        %v1204 = vsel %vm1203, %v1201, %v1198
        %v1205 = vadd.f32 %v1178, 1.0
        %v1206 = vlog2.pop %v1205
        %v1207 = vmul.f32 %v1206, 0.6931472
        %v1208 = vmul.f32 -0.5, %v1178
        %v1209 = vadd.f32 %v1208, 1.0
        %v1210 = vmul.f32 %v1209, %v1178
        %v1211 = vand.u32 2147483647, %v1178
        %vm1212 = vcmp.lt.f32.partialorder %v1211, 0.0004427343
        %v1213 = vsel %vm1212, %v1210, %v1207
        %v1214 = vadd.f32 %v1180, 1.0
        %v1215 = vlog2.pop %v1214
        %v1216 = vmul.f32 %v1215, 0.6931472
        %v1217 = vmul.f32 -0.5, %v1180
        %v1218 = vadd.f32 %v1217, 1.0
        %v1219 = vmul.f32 %v1218, %v1180
        %v1220 = vand.u32 2147483647, %v1180
        %vm1221 = vcmp.lt.f32.partialorder %v1220, 0.0004427343
        %v1222 = vsel %vm1221, %v1219, %v1216
        %v1223 = vadd.f32 %v1182, 1.0
        %v1224 = vlog2.pop %v1223
        %v1225 = vmul.f32 %v1224, 0.6931472
        %v1226 = vmul.f32 -0.5, %v1182
        %v1227 = vadd.f32 %v1226, 1.0
        %v1228 = vmul.f32 %v1227, %v1182
        %v1229 = vand.u32 2147483647, %v1182
        %vm1230 = vcmp.lt.f32.partialorder %v1229, 0.0004427343
        %v1231 = vsel %vm1230, %v1228, %v1225
        %v1232 = vadd.f32 %v1184, 1.0
        %v1233 = vlog2.pop %v1232
        %v1234 = vmul.f32 %v1233, 0.6931472
        %v1235 = vmul.f32 -0.5, %v1184
        %v1236 = vadd.f32 %v1235, 1.0
        %v1237 = vmul.f32 %v1236, %v1184
        %v1238 = vand.u32 2147483647, %v1184
        %vm1239 = vcmp.lt.f32.partialorder %v1238, 0.0004427343
        %v1240 = vsel %vm1239, %v1237, %v1234
        %v1241 = vadd.f32 %v1186, 1.0
        %v1242 = vlog2.pop %v1241
        %v1243 = vmul.f32 %v1242, 0.6931472
        %v1244 = vmul.f32 -0.5, %v1186
        %v1245 = vadd.f32 %v1244, 1.0
        %v1246 = vmul.f32 %v1245, %v1186
        %v1247 = vand.u32 2147483647, %v1186
        %vm1248 = vcmp.lt.f32.partialorder %v1247, 0.0004427343
        %v1249 = vsel %vm1248, %v1246, %v1243
        %v1250 = vadd.f32 %v1152, %v1195
        %v1251 = vadd.f32 %v1153, %v1204
        %v1252 = vadd.f32 %v1154, %v1213
        %v1253 = vadd.f32 %v1155, %v1222
        %v1254 = vadd.f32 %v1156, %v1231
        %v1255 = vadd.f32 %v1157, %v1240
        %v1256 = vadd.f32 %v1158, %v1249
        %v1257 = vmul.f32 %v1250, %v1138
        %v1258 = vmul.f32 %v1251, %v1139
        %v1259 = vmul.f32 %v1252, %v1140
        %v1260 = vmul.f32 %v1253, %v1141
        %v1261 = vmul.f32 %v1254, %v1142
        %v1262 = vmul.f32 %v1255, %v1143
        %v1263 = vmul.f32 %v1256, %v1144
        %vm1264 = vcmask 261120
        %v1265 = vsel %vm1264, %v1257, 0.0
        %1266 = vadd.xlane.f32.xlu0 %v1265
        %v1267 = vpop.xlane.xlu0 %1266
        %v1268 = vsel %vm1264, %v1258, 0.0
        %1269 = vadd.xlane.f32.xlu0 %v1268
        %v1270 = vpop.xlane.xlu0 %1269
        %v1271 = vsel %vm1264, %v1259, 0.0
        %1272 = vadd.xlane.f32.xlu0 %v1271
        %v1273 = vpop.xlane.xlu0 %1272
        %v1274 = vsel %vm1264, %v1260, 0.0
        %1275 = vadd.xlane.f32.xlu0 %v1274
        %v1276 = vpop.xlane.xlu0 %1275
        %v1277 = vsel %vm1264, %v1261, 0.0
        %1278 = vadd.xlane.f32.xlu0 %v1277
        %v1279 = vpop.xlane.xlu0 %1278
        %v1280 = vsel %vm1264, %v1262, 0.0
        %1281 = vadd.xlane.f32.xlu0 %v1280
        %v1282 = vpop.xlane.xlu0 %1281
        %v1283 = vsel %vm1264, %v1263, 0.0
        %1284 = vadd.xlane.f32.xlu0 %v1283
        %v1285 = vpop.xlane.xlu0 %1284
        %v1286 = vld [vmem:[%s368] sm:$0x1]
        %v1288 = vlaneseq
        %v1289 = vshrl.u32 %v1288, 7
        %v1290 = vsub.s32 0, %v1289
        %v1291 = vrot.slane %v1286, %v1290
        %1293 = vbcast.lane.b32.xlu0 %v1291, 256
        %v1294 = vpop.permute.xlu0 %1293
        %s1296 = sor.u32 256, 8
        %1297 = vbcast.lane.b32.xlu0 %v1291, %s1296
        %v1298 = vpop.permute.xlu0 %1297
        %s1300 = sor.u32 256, 16
        %1301 = vbcast.lane.b32.xlu0 %v1291, %s1300
        %v1302 = vpop.permute.xlu0 %1301
        %s1304 = sor.u32 256, 24
        %1305 = vbcast.lane.b32.xlu0 %v1291, %s1304
        %v1306 = vpop.permute.xlu0 %1305
        %s1308 = sor.u32 256, 32
        %1309 = vbcast.lane.b32.xlu0 %v1291, %s1308
        %v1310 = vpop.permute.xlu0 %1309
        %s1312 = sor.u32 256, 40
        %1313 = vbcast.lane.b32.xlu0 %v1291, %s1312
        %v1314 = vpop.permute.xlu0 %1313
        %s1316 = sor.u32 256, 48
        %1317 = vbcast.lane.b32.xlu0 %v1291, %s1316
        %v1318 = vpop.permute.xlu0 %1317
        %v1326 = vadd.f32 %v1267, %v1294
        %v1327 = vadd.f32 %v1270, %v1298
        %v1328 = vadd.f32 %v1273, %v1302
        %v1329 = vadd.f32 %v1276, %v1306
        %v1330 = vadd.f32 %v1279, %v1310
        %v1331 = vadd.f32 %v1282, %v1314
        %v1332 = vadd.f32 %v1285, %v1318
        %1340 = vset.pattern.permute.xlu0 0
        %1341 = vperm.xlu0 %1340, %v1326
        %v1342 = vpop.permute.xlu0 %1341
        %1343 = vset.pattern.permute.xlu0 0
        %1344 = vperm.xlu0 %1343, %v1327
        %v1345 = vpop.permute.xlu0 %1344
        %1346 = vset.pattern.permute.xlu0 0
        %1347 = vperm.xlu0 %1346, %v1328
        %v1348 = vpop.permute.xlu0 %1347
        %1349 = vset.pattern.permute.xlu0 0
        %1350 = vperm.xlu0 %1349, %v1329
        %v1351 = vpop.permute.xlu0 %1350
        %1352 = vset.pattern.permute.xlu0 0
        %1353 = vperm.xlu0 %1352, %v1330
        %v1354 = vpop.permute.xlu0 %1353
        %1355 = vset.pattern.permute.xlu0 0
        %1356 = vperm.xlu0 %1355, %v1331
        %v1357 = vpop.permute.xlu0 %1356
        %1358 = vset.pattern.permute.xlu0 0
        %1359 = vperm.xlu0 %1358, %v1332
        %v1360 = vpop.permute.xlu0 %1359
        %v1361 = vlaneseq
        %v1362 = vand.u32 %v1361, 127
        %v1363 = vlaneseq
        %v1364 = vshrl.u32 %v1363, 7
        %v1365 = vsub.s32 %v1362, %v1364
        %v1366 = vrot.slane %v1342, %v1365
        %v1367 = vadd.s32 %v1362, 4294967288
        %v1368 = vlaneseq
        %v1369 = vshrl.u32 %v1368, 7
        %v1370 = vsub.s32 %v1367, %v1369
        %v1371 = vrot.slane %v1345, %v1370
        %vm1372 = vcmask 130112
        %v1373 = vsel %vm1372, %v1371, %v1366
        %v1374 = vadd.s32 %v1362, 4294967280
        %v1375 = vlaneseq
        %v1376 = vshrl.u32 %v1375, 7
        %v1377 = vsub.s32 %v1374, %v1376
        %v1378 = vrot.slane %v1348, %v1377
        %vm1379 = vcmask 195712
        %v1380 = vsel %vm1379, %v1378, %v1373
        %v1381 = vadd.s32 %v1362, 4294967272
        %v1382 = vlaneseq
        %v1383 = vshrl.u32 %v1382, 7
        %v1384 = vsub.s32 %v1381, %v1383
        %v1385 = vrot.slane %v1351, %v1384
        %vm1386 = vcmask 261312
        %v1387 = vsel %vm1386, %v1385, %v1380
        %v1388 = vadd.s32 %v1362, 4294967264
        %v1389 = vlaneseq
        %v1390 = vshrl.u32 %v1389, 7
        %v1391 = vsub.s32 %v1388, %v1390
        %v1392 = vrot.slane %v1354, %v1391
        %vm1393 = vcmask 326912
        %v1394 = vsel %vm1393, %v1392, %v1387
        %v1395 = vadd.s32 %v1362, 4294967256
        %v1396 = vlaneseq
        %v1397 = vshrl.u32 %v1396, 7
        %v1398 = vsub.s32 %v1395, %v1397
        %v1399 = vrot.slane %v1357, %v1398
        %vm1400 = vcmask 392512
        %v1401 = vsel %vm1400, %v1399, %v1394
        %v1402 = vadd.s32 %v1362, 4294967248
        %v1403 = vlaneseq
        %v1404 = vshrl.u32 %v1403, 7
        %v1405 = vsub.s32 %v1402, %v1404
        %v1406 = vrot.slane %v1360, %v1405
        %vm1407 = vcmask 458112
        %v1408 = vsel %vm1407, %v1406, %v1401
        %vm1410 = vcmask 450560
        %1411 = vst.msk [vmem:[%s323] sm:$0x1] %vm1410, %v1408
        %s1412 = sand.u32 %s174, 1
        %s1413 = scalar_lea.sflag [#allocation3], %s1412
        %s1414 = sand.u32 %s174, 1
        %s1415 = scalar_lea.vmem [#allocation2], %s1414
        // Predicated region
        $region45: #{tpu_custom_call.1} parent=43 // pred_check
          %p1416 = pneg %p184
        $region46: #{tpu_custom_call.1} parent=43 // pred_check_branch
          %1418 = sbr.rel (%p1416) target = $region48
        $region47: #{tpu_custom_call.1} parent=43 // pred_region
          %s1420 = ssub.s32 16, 16
          %1421 = vsyncadd %s1413, %s1420
          %s1422 = smul.addr %s20, 16
          %s1423 = scalar_lea.hbm %s6, %s1422
          %s1425 = sshll.u32 %s1415, 4
          %s1426 = int_to_ptr.vmem [resolvable:$true] %s1425
          %1428 = dma.vmem_to_hbm [thread:$0]  %s1426, 16, %s1423, %s1413
        $region48: #{tpu_custom_call.1} parent=43 // pred_fallthru
          _
      $region44: #{tpu_custom_call.1} parent=5 // pred_fallthru
        _
      %p1429 = scmp.le.s32.totalorder 2, %s15
      // Predicated region
      $region49: #{tpu_custom_call.1} parent=5 // pred_check
        %p1430 = pneg %p1429
      $region50: #{tpu_custom_call.1} parent=5 // pred_check_branch
        %1432 = sbr.rel (%p1430) target = $region52
      $region51: #{tpu_custom_call.1} parent=5 // pred_region
        %s1433 = ssub.s32 %s15, 2
        // Predicated region
        $region53: #{tpu_custom_call.1} parent=51 // pred_check
          %p1434 = pneg %p190
        $region54: #{tpu_custom_call.1} parent=51 // pred_check_branch
          %1436 = sbr.rel (%p1434) target = $region56
        $region55: #{tpu_custom_call.1} parent=51 // pred_region
          %s1437 = sand.u32 %s175, 1
          %s1438 = scalar_lea.sflag [#allocation3], %s1437
          %s1439 = sand.u32 %s175, 1
          %s1440 = scalar_lea.vmem [#allocation2], %s1439
          %1441 = dma.done %s1438, 16
        $region56: #{tpu_custom_call.1} parent=51 // pred_fallthru
          _
      $region52: #{tpu_custom_call.1} parent=5 // pred_fallthru
        _
    $region6: #{tpu_custom_call.1} parent=1 // loop_footer
      %s19 = sadd.s32 1, %s15
    $region7: #{tpu_custom_call.1} parent=1 // loop_footer_branch
      %14 = sbr.rel target = $region3
    $region8: #{tpu_custom_call.1} parent=1 // loop_exit
      _
    %1442 = vsyncpa [#allocation3], 1
    %s1443 = scalar_lea.sflag [#allocation3], 1
    %1444 = vsyncpa %s1443, 1

</llo_original>
